<compile_context>
chip_gen: v5e
topology: v5e:2x2
jax: 0.10.0
libtpu: 0.0.40
codegen_flags: <defaults>
</compile_context>

<pallas_src>
import functools
import math

import jax
import jax.numpy as jnp
from jax.experimental import pallas as pl
from jax.experimental.pallas import tpu as pltpu

# ----------------------- hyperparameters (small, synthetic) ------------------
OUTPUT_DIM = 64   # vocab size == fc output dim
EMB_DIM = 32
HID_DIM = 32
N_LAYERS = 2
BATCH = 8         # multiple of 8 -> full-sublane vregs/stores
T_STEPS = 6       # decode steps fused into one pallas_call
DROPOUT = 0.5     # TODO(synk): dropout is identity here (inference/eval mode)

LANE = 128
V_PAD = ((OUTPUT_DIM + LANE - 1) // LANE) * LANE   # lane-dense fc output width
IN_STACK = max(EMB_DIM, HID_DIM)                   # stacked W_ih row count


# ------------------------------- fused kernel --------------------------------
def _decoder_kernel(tok_ref, emb_ref, h0_ref, c0_ref,
                    w_ih_ref, w_hh_ref, b_ref, fcw_ref, fcb_ref,
                    pred_ref, h_ref, c_ref,
                    *, hid_dim, n_layers, vocab):
    """One grid step == one Decoder.forward: embedding gather (one-hot MXU
    matmul) + n_layers LSTM cells + fc, all on VMEM-resident weights."""
    t = pl.program_id(0)
    H = hid_dim

    # Initialize the output-resident hidden/cell accumulators from the
    # caller-provided state on the first step only.
    @pl.when(t == 0)
    def _init():
        h_ref[...] = h0_ref[...]
        c_ref[...] = c0_ref[...]

    # ---- embedding gather via one-hot matmul on the MXU --------------------
    tok = tok_ref[0]                                            # [B, 1] int32
    iota_v = jax.lax.broadcasted_iota(jnp.int32, (tok.shape[0], vocab), 1)
    one_hot = (tok == iota_v).astype(jnp.float32)               # [B, V]
    x = jnp.dot(one_hot, emb_ref[...],
                preferred_element_type=jnp.float32)             # [B, E]
    # TODO(synk): embedding dropout is identity (eval mode).

    # ---- LSTM layers (single time step each) --------------------------------
    for layer in range(n_layers):
        h = h_ref[layer]                                        # [B, H]
        c = c_ref[layer]                                        # [B, H]
        in_dim = x.shape[1]
        gates = (jnp.dot(x, w_ih_ref[layer][:in_dim, :],
                         preferred_element_type=jnp.float32)
                 + jnp.dot(h, w_hh_ref[layer],
                           preferred_element_type=jnp.float32)
                 + b_ref[layer])                                # [B, 4H]
        # Single full-width transcendental pass over the [B, 4H] gates:
        #   sigmoid(z) = 0.5 * (tanh(z / 2) + 1)      (i, f, o gates)
        #   g-gate columns of W/b were pre-scaled by 2, so tanh(gates/2)
        #   there reproduces tanh(raw_g) exactly.
        tnh = jnp.tanh(0.5 * gates)
        i_g = 0.5 * (tnh[:, 0 * H:1 * H] + 1.0)
        f_g = 0.5 * (tnh[:, 1 * H:2 * H] + 1.0)
        g_g = tnh[:, 2 * H:3 * H]
        o_g = 0.5 * (tnh[:, 3 * H:4 * H] + 1.0)
        c_new = f_g * c + i_g * g_g
        h_new = o_g * jnp.tanh(c_new)
        h_ref[layer] = h_new
        c_ref[layer] = c_new
        x = h_new
        # TODO(synk): inter-layer LSTM dropout is training-only; identity here.

    # ---- fc_out on last layer's hidden; lane-dense (V_PAD=128) store -------
    pred_ref[0] = (jnp.dot(x, fcw_ref[...],
                           preferred_element_type=jnp.float32)
                   + fcb_ref[...])


# ------------------------------ wrapper ---------------------------------------
def decoder_forward(params, tokens, hidden, cell):
    """
    tokens: [B] int32 (single step, matches Decoder.forward) or [T, B] int32
            (T teacher-forced decode steps fused into one kernel launch).
    hidden, cell: [n_layers, B, H]
    returns: prediction [B, output_dim] (or [T, B, output_dim]), hidden, cell
    """
    single_step = tokens.ndim == 1
    toks = tokens[None, :] if single_step else tokens
    T, B = toks.shape
    n_layers, _, H = hidden.shape
    V, E = params["embedding"].shape
    v_pad = params["fc_w_pad"].shape[1]

    kernel = functools.partial(_decoder_kernel, hid_dim=H,
                               n_layers=n_layers, vocab=V)

    const3 = lambda t: (0, 0, 0)
    const2 = lambda t: (0, 0)

    grid_spec = pltpu.PrefetchScalarGridSpec(
        num_scalar_prefetch=0,
        grid=(T,),
        in_specs=[
            pl.BlockSpec((1, B, 1), lambda t: (t, 0, 0)),          # tokens
            pl.BlockSpec((V, E), const2),                          # embedding
            pl.BlockSpec((n_layers, B, H), const3),                # h0
            pl.BlockSpec((n_layers, B, H), const3),                # c0
            pl.BlockSpec(params["w_ih_s"].shape, const3),          # W_ih stack
            pl.BlockSpec(params["w_hh_s"].shape, const3),          # W_hh stack
            pl.BlockSpec(params["bias_s"].shape, const3),          # bias stack
            pl.BlockSpec(params["fc_w_pad"].shape, const2),        # fc W
            pl.BlockSpec(params["fc_b_pad"].shape, const2),        # fc b
        ],
        out_specs=(
            pl.BlockSpec((1, B, v_pad), lambda t: (t, 0, 0)),      # pred[t]
            pl.BlockSpec((n_layers, B, H), const3),                # h (resident)
            pl.BlockSpec((n_layers, B, H), const3),                # c (resident)
        ),
    )

    pred_pad, h_new, c_new = pl.pallas_call(
        kernel,
        grid_spec=grid_spec,
        out_shape=(jax.ShapeDtypeStruct((T, B, v_pad), jnp.float32),
                   jax.ShapeDtypeStruct((n_layers, B, H), jnp.float32),
                   jax.ShapeDtypeStruct((n_layers, B, H), jnp.float32)),
        compiler_params=pltpu.CompilerParams(
            dimension_semantics=("arbitrary",)),
    )(toks[:, :, None].astype(jnp.int32), params["embedding"],
      hidden, cell,
      params["w_ih_s"], params["w_hh_s"], params["bias_s"],
      params["fc_w_pad"], params["fc_b_pad"])

    pred = pred_pad[..., :V]
    if single_step:
        return pred[0], h_new, c_new
    return pred, h_new, c_new


# --------------------------- parameter init -----------------------------------
def init_params(key):
    keys = jax.random.split(key, 2 + 4 * N_LAYERS)
    k = 1.0 / math.sqrt(HID_DIM)
    params = {}

    # nn.Embedding(output_dim, emb_dim): N(0, 1) — stored flat [V, E].
    emb = jax.random.normal(keys[0], (OUTPUT_DIM, EMB_DIM), jnp.float32)
    params["embedding"] = emb

    # nn.LSTM(emb_dim, hid_dim, n_layers): U(-1/sqrt(H), 1/sqrt(H))
    w_ih_t, w_hh_t, bias = [], [], []
    w_ih_s, w_hh_s, bias_s = [], [], []
    for l in range(N_LAYERS):
        in_dim = EMB_DIM if l == 0 else HID_DIM
        kw = keys[1 + 4 * l:1 + 4 * (l + 1)]
        wih = jax.random.uniform(kw[0], (4 * HID_DIM, in_dim), jnp.float32, -k, k)
        whh = jax.random.uniform(kw[1], (4 * HID_DIM, HID_DIM), jnp.float32, -k, k)
        bih = jax.random.uniform(kw[2], (4 * HID_DIM,), jnp.float32, -k, k)
        bhh = jax.random.uniform(kw[3], (4 * HID_DIM,), jnp.float32, -k, k)
        w_ih_t.append(wih.T)                      # [In, 4H]  (reference)
        w_hh_t.append(whh.T)                      # [H, 4H]   (reference)
        bias.append((bih + bhh)[None, :])         # [1, 4H]   (reference)
        # Kernel form: g-gate columns (2H:3H, PyTorch order i,f,g,o) pre-scaled
        # by 2 for the single tanh(gates/2) pass; layer-0 W_ih rows zero-padded
        # to IN_STACK so layers stack into one array.
        wi = wih.T.at[:, 2 * HID_DIM:3 * HID_DIM].multiply(2.0)
        wh = whh.T.at[:, 2 * HID_DIM:3 * HID_DIM].multiply(2.0)
        bc = (bih + bhh)[None, :].at[:, 2 * HID_DIM:3 * HID_DIM].multiply(2.0)
        wi_pad = jnp.zeros((IN_STACK, 4 * HID_DIM), jnp.float32).at[:in_dim].set(wi)
        w_ih_s.append(wi_pad)
        w_hh_s.append(wh)
        bias_s.append(bc)
    params["w_ih_t"], params["w_hh_t"], params["bias"] = w_ih_t, w_hh_t, bias
    params["w_ih_s"] = jnp.stack(w_ih_s)          # [L, IN_STACK, 4H]
    params["w_hh_s"] = jnp.stack(w_hh_s)          # [L, H, 4H]
    params["bias_s"] = jnp.stack(bias_s)          # [L, 1, 4H]

    # nn.Linear(hid_dim, output_dim): U(-1/sqrt(H), 1/sqrt(H))
    kf1, kf2 = jax.random.split(keys[-1])
    fc_w = jax.random.uniform(kf1, (OUTPUT_DIM, HID_DIM), jnp.float32, -k, k)
    fc_b = jax.random.uniform(kf2, (OUTPUT_DIM,), jnp.float32, -k, k)
    params["fc_w_t"] = fc_w.T                     # [H, V]  (reference)
    params["fc_b"] = fc_b[None, :]                # [1, V]  (reference)
    # kernel form: zero-padded to 128 lanes for a lane-dense output store.
    params["fc_w_pad"] = jnp.zeros((HID_DIM, V_PAD),
                                   jnp.float32).at[:, :OUTPUT_DIM].set(fc_w.T)
    params["fc_b_pad"] = jnp.zeros((1, V_PAD),
                                   jnp.float32).at[:, :OUTPUT_DIM].set(fc_b[None, :])
    return params


# -------------------------- pure-JAX reference --------------------------------
def _reference_forward(params, input_tokens, hidden, cell):
    """One application of Decoder.forward (eval mode)."""
    x = jnp.take(params["embedding"], input_tokens, axis=0)
    new_h, new_c = [], []
    H = HID_DIM
    for l in range(N_LAYERS):
        gates = (x @ params["w_ih_t"][l] + hidden[l] @ params["w_hh_t"][l]
                 + params["bias"][l])
        i = jax.nn.sigmoid(gates[:, 0 * H:1 * H])
        f = jax.nn.sigmoid(gates[:, 1 * H:2 * H])
        g = jnp.tanh(gates[:, 2 * H:3 * H])
        o = jax.nn.sigmoid(gates[:, 3 * H:4 * H])
        c_l = f * cell[l] + i * g
        h_l = o * jnp.tanh(c_l)
        new_h.append(h_l)
        new_c.append(c_l)
        x = h_l
    pred = x @ params["fc_w_t"] + params["fc_b"]
    return pred, jnp.stack(new_h), jnp.stack(new_c)


# -------------------------------- main -----------------------------------------
if __name__ == "__main__":
    key = jax.random.PRNGKey(0)
    kp, ki, kh, kc = jax.random.split(key, 4)
    params = init_params(kp)

    tokens = jax.random.randint(ki, (T_STEPS, BATCH), 0, OUTPUT_DIM, jnp.int32)
    hidden = jax.random.normal(kh, (N_LAYERS, BATCH, HID_DIM), jnp.float32)
    cell = jax.random.normal(kc, (N_LAYERS, BATCH, HID_DIM), jnp.float32)

    fwd = jax.jit(decoder_forward)

    # Fused T-step decode (one pallas_call, grid=(T,)).
    preds, h_new, c_new = fwd(params, tokens, hidden, cell)
    jax.block_until_ready((preds, h_new, c_new))

    # Reference: T sequential applications of the single-step module forward.
    pred_list, h_r, c_r = [], hidden, cell
    for t in range(T_STEPS):
        p_t, h_r, c_r = _reference_forward(params, tokens[t], h_r, c_r)
        pred_list.append(p_t)
    preds_r = jnp.stack(pred_list)

    assert preds.shape == (T_STEPS, BATCH, OUTPUT_DIM)
    assert h_new.shape == (N_LAYERS, BATCH, HID_DIM)
    assert c_new.shape == (N_LAYERS, BATCH, HID_DIM)
    assert jnp.allclose(preds, preds_r, atol=1e-4, rtol=1e-4)
    assert jnp.allclose(h_new, h_r, atol=1e-4, rtol=1e-4)
    assert jnp.allclose(c_new, c_r, atol=1e-4, rtol=1e-4)

    # Single-step API (matches Decoder.forward(input, hidden, cell)).
    pred1, h1, c1 = fwd(params, tokens[0], hidden, cell)
    jax.block_until_ready((pred1, h1, c1))
    p_ref, h_ref1, c_ref1 = _reference_forward(params, tokens[0], hidden, cell)
    assert pred1.shape == (BATCH, OUTPUT_DIM)
    assert jnp.allclose(pred1, p_ref, atol=1e-4, rtol=1e-4)
    assert jnp.allclose(h1, h_ref1, atol=1e-4, rtol=1e-4)
    assert jnp.allclose(c1, c_ref1, atol=1e-4, rtol=1e-4)

    print("KERNEL_OK")
</pallas_src>

<mosaic_0001>
module attributes {stable_mosaic.version = 11 : i64} {
  func.func @_decoder_kernel(%arg0: i32, %arg1: memref<1x8x1xi32, #tpu.memory_space<vmem>>, %arg2: memref<64x32xf32, #tpu.memory_space<vmem>>, %arg3: memref<2x8x32xf32, #tpu.memory_space<vmem>>, %arg4: memref<2x8x32xf32, #tpu.memory_space<vmem>>, %arg5: memref<2x32x128xf32, #tpu.memory_space<vmem>>, %arg6: memref<2x32x128xf32, #tpu.memory_space<vmem>>, %arg7: memref<2x1x128xf32, #tpu.memory_space<vmem>>, %arg8: memref<32x128xf32, #tpu.memory_space<vmem>>, %arg9: memref<1x128xf32, #tpu.memory_space<vmem>>, %arg10: memref<1x8x128xf32, #tpu.memory_space<vmem>>, %arg11: memref<2x8x32xf32, #tpu.memory_space<vmem>>, %arg12: memref<2x8x32xf32, #tpu.memory_space<vmem>>) attributes {dimension_semantics = [#tpu.dimension_semantics<arbitrary>], iteration_bounds = array<i64: 6>, scalar_prefetch = 0 : i64, scratch_operands = 0 : i64, tpu.core_type = #tpu.core_type<tc>, window_params = [{transform_indices = @transform_0, window_bounds = array<i64: 1, 8, 1>}, {pipeline_mode = #tpu.pipeline_mode<synchronous>, transform_indices = @transform_1, window_bounds = array<i64: 64, 32>}, {pipeline_mode = #tpu.pipeline_mode<synchronous>, transform_indices = @transform_2, window_bounds = array<i64: 2, 8, 32>}, {pipeline_mode = #tpu.pipeline_mode<synchronous>, transform_indices = @transform_3, window_bounds = array<i64: 2, 8, 32>}, {pipeline_mode = #tpu.pipeline_mode<synchronous>, transform_indices = @transform_4, window_bounds = array<i64: 2, 32, 128>}, {pipeline_mode = #tpu.pipeline_mode<synchronous>, transform_indices = @transform_5, window_bounds = array<i64: 2, 32, 128>}, {pipeline_mode = #tpu.pipeline_mode<synchronous>, transform_indices = @transform_6, window_bounds = array<i64: 2, 1, 128>}, {pipeline_mode = #tpu.pipeline_mode<synchronous>, transform_indices = @transform_7, window_bounds = array<i64: 32, 128>}, {pipeline_mode = #tpu.pipeline_mode<synchronous>, transform_indices = @transform_8, window_bounds = array<i64: 1, 128>}, {transform_indices = @transform_9, window_bounds = array<i64: 1, 8, 128>}, {pipeline_mode = #tpu.pipeline_mode<synchronous>, transform_indices = @transform_10, window_bounds = array<i64: 2, 8, 32>}, {pipeline_mode = #tpu.pipeline_mode<synchronous>, transform_indices = @transform_11, window_bounds = array<i64: 2, 8, 32>}]} {
    %c0_i32 = arith.constant 0 : i32
    %0 = arith.cmpi eq, %arg0, %c0_i32 : i32
    %1 = arith.extui %0 : i1 to i32
    %c0_i32_0 = arith.constant 0 : i32
    %2 = arith.cmpi ne, %1, %c0_i32_0 : i32
    scf.if %2 {
      %c0_72 = arith.constant 0 : index
      %c0_73 = arith.constant 0 : index
      %c0_74 = arith.constant 0 : index
      %110 = vector.load %arg3[%c0_72, %c0_73, %c0_74] : memref<2x8x32xf32, #tpu.memory_space<vmem>>, vector<2x8x32xf32>
      %c0_75 = arith.constant 0 : index
      %c0_76 = arith.constant 0 : index
      %c0_77 = arith.constant 0 : index
      %111 = vector.load %arg11[%c0_75, %c0_76, %c0_77] : memref<2x8x32xf32, #tpu.memory_space<vmem>>, vector<2x8x32xf32>
      tpu.vector_store %arg11[%c0_75, %c0_76, %c0_77], %110 {strides = array<i32>} : memref<2x8x32xf32, #tpu.memory_space<vmem>>, vector<2x8x32xf32>,
      %c0_78 = arith.constant 0 : index
      %c0_79 = arith.constant 0 : index
      %c0_80 = arith.constant 0 : index
      %112 = vector.load %arg4[%c0_78, %c0_79, %c0_80] : memref<2x8x32xf32, #tpu.memory_space<vmem>>, vector<2x8x32xf32>
      %c0_81 = arith.constant 0 : index
      %c0_82 = arith.constant 0 : index
      %c0_83 = arith.constant 0 : index
      %113 = vector.load %arg12[%c0_81, %c0_82, %c0_83] : memref<2x8x32xf32, #tpu.memory_space<vmem>>, vector<2x8x32xf32>
      tpu.vector_store %arg12[%c0_81, %c0_82, %c0_83], %112 {strides = array<i32>} : memref<2x8x32xf32, #tpu.memory_space<vmem>>, vector<2x8x32xf32>,
    } else {
    }
    %c0 = arith.constant 0 : index
    %c0_1 = arith.constant 0 : index
    %c0_2 = arith.constant 0 : index
    %3 = vector.load %arg1[%c0, %c0_1, %c0_2] : memref<1x8x1xi32, #tpu.memory_space<vmem>>, vector<1x8x1xi32>
    %4 = vector.shape_cast %3 : vector<1x8x1xi32> to vector<8x1xi32>
    %5 = tpu.iota {dimensions = array<i32: 1>} : vector<8x64xi32>
    %6 = vector.broadcast %4 : vector<8x1xi32> to vector<8x64xi32>
    %7 = arith.cmpi eq, %6, %5 : vector<8x64xi32>
    %8 = arith.extui %7 : vector<8x64xi1> to vector<8x64xi32>
    %9 = arith.sitofp %8 : vector<8x64xi32> to vector<8x64xf32>
    %c0_3 = arith.constant 0 : index
    %c0_4 = arith.constant 0 : index
    %10 = vector.load %arg2[%c0_3, %c0_4] : memref<64x32xf32, #tpu.memory_space<vmem>>, vector<64x32xf32>
    %cst = arith.constant dense<0.000000e+00> : vector<8x32xf32>
    %11 = tpu.matmul %9, %10, %cst {dimension_numbers = #tpu.dot_dimension_numbers<[1], [0], [0], [1], [0, 0, 1, 1], [], []>} : vector<8x64xf32>, vector<64x32xf32>, vector<8x32xf32> -> vector<8x32xf32>
    %c0_5 = arith.constant 0 : index
    %c0_6 = arith.constant 0 : index
    %c0_7 = arith.constant 0 : index
    %12 = vector.load %arg11[%c0_5, %c0_6, %c0_7] : memref<2x8x32xf32, #tpu.memory_space<vmem>>, vector<1x8x32xf32>
    %13 = vector.shape_cast %12 : vector<1x8x32xf32> to vector<8x32xf32>
    %c0_8 = arith.constant 0 : index
    %c0_9 = arith.constant 0 : index
    %c0_10 = arith.constant 0 : index
    %14 = vector.load %arg12[%c0_8, %c0_9, %c0_10] : memref<2x8x32xf32, #tpu.memory_space<vmem>>, vector<1x8x32xf32>
    %15 = vector.shape_cast %14 : vector<1x8x32xf32> to vector<8x32xf32>
    %c0_11 = arith.constant 0 : index
    %c0_12 = arith.constant 0 : index
    %c0_13 = arith.constant 0 : index
    %16 = vector.load %arg5[%c0_11, %c0_12, %c0_13] : memref<2x32x128xf32, #tpu.memory_space<vmem>>, vector<1x32x128xf32>
    %17 = vector.shape_cast %16 : vector<1x32x128xf32> to vector<32x128xf32>
    %cst_14 = arith.constant dense<0.000000e+00> : vector<8x128xf32>
    %18 = tpu.matmul %11, %17, %cst_14 {dimension_numbers = #tpu.dot_dimension_numbers<[1], [0], [0], [1], [0, 0, 1, 1], [], []>} : vector<8x32xf32>, vector<32x128xf32>, vector<8x128xf32> -> vector<8x128xf32>
    %c0_15 = arith.constant 0 : index
    %c0_16 = arith.constant 0 : index
    %c0_17 = arith.constant 0 : index
    %19 = vector.load %arg6[%c0_15, %c0_16, %c0_17] : memref<2x32x128xf32, #tpu.memory_space<vmem>>, vector<1x32x128xf32>
    %20 = vector.shape_cast %19 : vector<1x32x128xf32> to vector<32x128xf32>
    %cst_18 = arith.constant dense<0.000000e+00> : vector<8x128xf32>
    %21 = tpu.matmul %13, %20, %cst_18 {dimension_numbers = #tpu.dot_dimension_numbers<[1], [0], [0], [1], [0, 0, 1, 1], [], []>} : vector<8x32xf32>, vector<32x128xf32>, vector<8x128xf32> -> vector<8x128xf32>
    %22 = arith.addf %18, %21 : vector<8x128xf32>
    %c0_19 = arith.constant 0 : index
    %c0_20 = arith.constant 0 : index
    %c0_21 = arith.constant 0 : index
    %23 = vector.load %arg7[%c0_19, %c0_20, %c0_21] : memref<2x1x128xf32, #tpu.memory_space<vmem>>, vector<1x1x128xf32>
    %24 = vector.shape_cast %23 : vector<1x1x128xf32> to vector<1x128xf32>
    %25 = vector.broadcast %24 : vector<1x128xf32> to vector<8x128xf32>
    %26 = arith.addf %22, %25 : vector<8x128xf32>
    %cst_22 = arith.constant 5.000000e-01 : f32
    %27 = vector.broadcast %cst_22 : f32 to vector<8x128xf32>
    %28 = arith.mulf %27, %26 : vector<8x128xf32>
    %29 = math.tanh %28 : vector<8x128xf32>
    %30 = vector.extract_strided_slice %29 {offsets = [0, 0], sizes = [8, 32], strides = [1, 1]} : vector<8x128xf32> to vector<8x32xf32>
    %cst_23 = arith.constant 1.000000e+00 : f32
    %31 = vector.broadcast %cst_23 : f32 to vector<8x32xf32>
    %32 = arith.addf %30, %31 : vector<8x32xf32>
    %cst_24 = arith.constant 5.000000e-01 : f32
    %33 = vector.broadcast %cst_24 : f32 to vector<8x32xf32>
    %34 = arith.mulf %33, %32 : vector<8x32xf32>
    %35 = vector.extract_strided_slice %29 {offsets = [0, 32], sizes = [8, 32], strides = [1, 1]} : vector<8x128xf32> to vector<8x32xf32>
    %cst_25 = arith.constant 1.000000e+00 : f32
    %36 = vector.broadcast %cst_25 : f32 to vector<8x32xf32>
    %37 = arith.addf %35, %36 : vector<8x32xf32>
    %cst_26 = arith.constant 5.000000e-01 : f32
    %38 = vector.broadcast %cst_26 : f32 to vector<8x32xf32>
    %39 = arith.mulf %38, %37 : vector<8x32xf32>
    %40 = vector.extract_strided_slice %29 {offsets = [0, 64], sizes = [8, 32], strides = [1, 1]} : vector<8x128xf32> to vector<8x32xf32>
    %41 = vector.extract_strided_slice %29 {offsets = [0, 96], sizes = [8, 32], strides = [1, 1]} : vector<8x128xf32> to vector<8x32xf32>
    %cst_27 = arith.constant 1.000000e+00 : f32
    %42 = vector.broadcast %cst_27 : f32 to vector<8x32xf32>
    %43 = arith.addf %41, %42 : vector<8x32xf32>
    %cst_28 = arith.constant 5.000000e-01 : f32
    %44 = vector.broadcast %cst_28 : f32 to vector<8x32xf32>
    %45 = arith.mulf %44, %43 : vector<8x32xf32>
    %46 = arith.mulf %39, %15 : vector<8x32xf32>
    %47 = arith.mulf %34, %40 : vector<8x32xf32>
    %48 = arith.addf %46, %47 : vector<8x32xf32>
    %49 = math.tanh %48 : vector<8x32xf32>
    %50 = arith.mulf %45, %49 : vector<8x32xf32>
    %c0_29 = arith.constant 0 : index
    %c0_30 = arith.constant 0 : index
    %c0_31 = arith.constant 0 : index
    %51 = vector.load %arg11[%c0_29, %c0_30, %c0_31] : memref<2x8x32xf32, #tpu.memory_space<vmem>>, vector<1x8x32xf32>
    %52 = vector.shape_cast %51 : vector<1x8x32xf32> to vector<8x32xf32>
    %53 = vector.shape_cast %50 : vector<8x32xf32> to vector<1x8x32xf32>
    tpu.vector_store %arg11[%c0_29, %c0_30, %c0_31], %53 {strides = array<i32>} : memref<2x8x32xf32, #tpu.memory_space<vmem>>, vector<1x8x32xf32>,
    %c0_32 = arith.constant 0 : index
    %c0_33 = arith.constant 0 : index
    %c0_34 = arith.constant 0 : index
    %54 = vector.load %arg12[%c0_32, %c0_33, %c0_34] : memref<2x8x32xf32, #tpu.memory_space<vmem>>, vector<1x8x32xf32>
    %55 = vector.shape_cast %54 : vector<1x8x32xf32> to vector<8x32xf32>
    %56 = vector.shape_cast %48 : vector<8x32xf32> to vector<1x8x32xf32>
    tpu.vector_store %arg12[%c0_32, %c0_33, %c0_34], %56 {strides = array<i32>} : memref<2x8x32xf32, #tpu.memory_space<vmem>>, vector<1x8x32xf32>,
    %c1 = arith.constant 1 : index
    %c0_35 = arith.constant 0 : index
    %c0_36 = arith.constant 0 : index
    %57 = vector.load %arg11[%c1, %c0_35, %c0_36] : memref<2x8x32xf32, #tpu.memory_space<vmem>>, vector<1x8x32xf32>
    %58 = vector.shape_cast %57 : vector<1x8x32xf32> to vector<8x32xf32>
    %c1_37 = arith.constant 1 : index
    %c0_38 = arith.constant 0 : index
    %c0_39 = arith.constant 0 : index
    %59 = vector.load %arg12[%c1_37, %c0_38, %c0_39] : memref<2x8x32xf32, #tpu.memory_space<vmem>>, vector<1x8x32xf32>
    %60 = vector.shape_cast %59 : vector<1x8x32xf32> to vector<8x32xf32>
    %c1_40 = arith.constant 1 : index
    %c0_41 = arith.constant 0 : index
    %c0_42 = arith.constant 0 : index
    %61 = vector.load %arg5[%c1_40, %c0_41, %c0_42] : memref<2x32x128xf32, #tpu.memory_space<vmem>>, vector<1x32x128xf32>
    %62 = vector.shape_cast %61 : vector<1x32x128xf32> to vector<32x128xf32>
    %cst_43 = arith.constant dense<0.000000e+00> : vector<8x128xf32>
    %63 = tpu.matmul %50, %62, %cst_43 {dimension_numbers = #tpu.dot_dimension_numbers<[1], [0], [0], [1], [0, 0, 1, 1], [], []>} : vector<8x32xf32>, vector<32x128xf32>, vector<8x128xf32> -> vector<8x128xf32>
    %c1_44 = arith.constant 1 : index
    %c0_45 = arith.constant 0 : index
    %c0_46 = arith.constant 0 : index
    %64 = vector.load %arg6[%c1_44, %c0_45, %c0_46] : memref<2x32x128xf32, #tpu.memory_space<vmem>>, vector<1x32x128xf32>
    %65 = vector.shape_cast %64 : vector<1x32x128xf32> to vector<32x128xf32>
    %cst_47 = arith.constant dense<0.000000e+00> : vector<8x128xf32>
    %66 = tpu.matmul %58, %65, %cst_47 {dimension_numbers = #tpu.dot_dimension_numbers<[1], [0], [0], [1], [0, 0, 1, 1], [], []>} : vector<8x32xf32>, vector<32x128xf32>, vector<8x128xf32> -> vector<8x128xf32>
    %67 = arith.addf %63, %66 : vector<8x128xf32>
    %c1_48 = arith.constant 1 : index
    %c0_49 = arith.constant 0 : index
    %c0_50 = arith.constant 0 : index
    %68 = vector.load %arg7[%c1_48, %c0_49, %c0_50] : memref<2x1x128xf32, #tpu.memory_space<vmem>>, vector<1x1x128xf32>
    %69 = vector.shape_cast %68 : vector<1x1x128xf32> to vector<1x128xf32>
    %70 = vector.broadcast %69 : vector<1x128xf32> to vector<8x128xf32>
    %71 = arith.addf %67, %70 : vector<8x128xf32>
    %cst_51 = arith.constant 5.000000e-01 : f32
    %72 = vector.broadcast %cst_51 : f32 to vector<8x128xf32>
    %73 = arith.mulf %72, %71 : vector<8x128xf32>
    %74 = math.tanh %73 : vector<8x128xf32>
    %75 = vector.extract_strided_slice %74 {offsets = [0, 0], sizes = [8, 32], strides = [1, 1]} : vector<8x128xf32> to vector<8x32xf32>
    %cst_52 = arith.constant 1.000000e+00 : f32
    %76 = vector.broadcast %cst_52 : f32 to vector<8x32xf32>
    %77 = arith.addf %75, %76 : vector<8x32xf32>
    %cst_53 = arith.constant 5.000000e-01 : f32
    %78 = vector.broadcast %cst_53 : f32 to vector<8x32xf32>
    %79 = arith.mulf %78, %77 : vector<8x32xf32>
    %80 = vector.extract_strided_slice %74 {offsets = [0, 32], sizes = [8, 32], strides = [1, 1]} : vector<8x128xf32> to vector<8x32xf32>
    %cst_54 = arith.constant 1.000000e+00 : f32
    %81 = vector.broadcast %cst_54 : f32 to vector<8x32xf32>
    %82 = arith.addf %80, %81 : vector<8x32xf32>
    %cst_55 = arith.constant 5.000000e-01 : f32
    %83 = vector.broadcast %cst_55 : f32 to vector<8x32xf32>
    %84 = arith.mulf %83, %82 : vector<8x32xf32>
    %85 = vector.extract_strided_slice %74 {offsets = [0, 64], sizes = [8, 32], strides = [1, 1]} : vector<8x128xf32> to vector<8x32xf32>
    %86 = vector.extract_strided_slice %74 {offsets = [0, 96], sizes = [8, 32], strides = [1, 1]} : vector<8x128xf32> to vector<8x32xf32>
    %cst_56 = arith.constant 1.000000e+00 : f32
    %87 = vector.broadcast %cst_56 : f32 to vector<8x32xf32>
    %88 = arith.addf %86, %87 : vector<8x32xf32>
    %cst_57 = arith.constant 5.000000e-01 : f32
    %89 = vector.broadcast %cst_57 : f32 to vector<8x32xf32>
    %90 = arith.mulf %89, %88 : vector<8x32xf32>
    %91 = arith.mulf %84, %60 : vector<8x32xf32>
    %92 = arith.mulf %79, %85 : vector<8x32xf32>
    %93 = arith.addf %91, %92 : vector<8x32xf32>
    %94 = math.tanh %93 : vector<8x32xf32>
    %95 = arith.mulf %90, %94 : vector<8x32xf32>
    %c1_58 = arith.constant 1 : index
    %c0_59 = arith.constant 0 : index
    %c0_60 = arith.constant 0 : index
    %96 = vector.load %arg11[%c1_58, %c0_59, %c0_60] : memref<2x8x32xf32, #tpu.memory_space<vmem>>, vector<1x8x32xf32>
    %97 = vector.shape_cast %96 : vector<1x8x32xf32> to vector<8x32xf32>
    %98 = vector.shape_cast %95 : vector<8x32xf32> to vector<1x8x32xf32>
    tpu.vector_store %arg11[%c1_58, %c0_59, %c0_60], %98 {strides = array<i32>} : memref<2x8x32xf32, #tpu.memory_space<vmem>>, vector<1x8x32xf32>,
    %c1_61 = arith.constant 1 : index
    %c0_62 = arith.constant 0 : index
    %c0_63 = arith.constant 0 : index
    %99 = vector.load %arg12[%c1_61, %c0_62, %c0_63] : memref<2x8x32xf32, #tpu.memory_space<vmem>>, vector<1x8x32xf32>
    %100 = vector.shape_cast %99 : vector<1x8x32xf32> to vector<8x32xf32>
    %101 = vector.shape_cast %93 : vector<8x32xf32> to vector<1x8x32xf32>
    tpu.vector_store %arg12[%c1_61, %c0_62, %c0_63], %101 {strides = array<i32>} : memref<2x8x32xf32, #tpu.memory_space<vmem>>, vector<1x8x32xf32>,
    %c0_64 = arith.constant 0 : index
    %c0_65 = arith.constant 0 : index
    %102 = vector.load %arg8[%c0_64, %c0_65] : memref<32x128xf32, #tpu.memory_space<vmem>>, vector<32x128xf32>
    %cst_66 = arith.constant dense<0.000000e+00> : vector<8x128xf32>
    %103 = tpu.matmul %95, %102, %cst_66 {dimension_numbers = #tpu.dot_dimension_numbers<[1], [0], [0], [1], [0, 0, 1, 1], [], []>} : vector<8x32xf32>, vector<32x128xf32>, vector<8x128xf32> -> vector<8x128xf32>
    %c0_67 = arith.constant 0 : index
    %c0_68 = arith.constant 0 : index
    %104 = vector.load %arg9[%c0_67, %c0_68] : memref<1x128xf32, #tpu.memory_space<vmem>>, vector<1x128xf32>
    %105 = vector.broadcast %104 : vector<1x128xf32> to vector<8x128xf32>
    %106 = arith.addf %103, %105 : vector<8x128xf32>
    %c0_69 = arith.constant 0 : index
    %c0_70 = arith.constant 0 : index
    %c0_71 = arith.constant 0 : index
    %107 = vector.load %arg10[%c0_69, %c0_70, %c0_71] : memref<1x8x128xf32, #tpu.memory_space<vmem>>, vector<1x8x128xf32>
    %108 = vector.shape_cast %107 : vector<1x8x128xf32> to vector<8x128xf32>
    %109 = vector.shape_cast %106 : vector<8x128xf32> to vector<1x8x128xf32>
    tpu.vector_store %arg10[%c0_69, %c0_70, %c0_71], %109 {strides = array<i32>} : memref<1x8x128xf32, #tpu.memory_space<vmem>>, vector<1x8x128xf32>,
    return
  }
  func.func @transform_0(%arg0: i32) -> (i32, i32, i32) {
    %c0_i32 = arith.constant 0 : i32
    %c0_i32_0 = arith.constant 0 : i32
    %c0_i32_1 = arith.constant 0 : i32
    return %arg0, %c0_i32, %c0_i32_0 : i32, i32, i32
  }
  func.func @transform_1(%arg0: i32) -> (i32, i32) {
    %c0_i32 = arith.constant 0 : i32
    %c0_i32_0 = arith.constant 0 : i32
    %c0_i32_1 = arith.constant 0 : i32
    return %c0_i32, %c0_i32_0 : i32, i32
  }
  func.func @transform_2(%arg0: i32) -> (i32, i32, i32) {
    %c0_i32 = arith.constant 0 : i32
    %c0_i32_0 = arith.constant 0 : i32
    %c0_i32_1 = arith.constant 0 : i32
    %c0_i32_2 = arith.constant 0 : i32
    return %c0_i32, %c0_i32_0, %c0_i32_1 : i32, i32, i32
  }
  func.func @transform_3(%arg0: i32) -> (i32, i32, i32) {
    %c0_i32 = arith.constant 0 : i32
    %c0_i32_0 = arith.constant 0 : i32
    %c0_i32_1 = arith.constant 0 : i32
    %c0_i32_2 = arith.constant 0 : i32
    return %c0_i32, %c0_i32_0, %c0_i32_1 : i32, i32, i32
  }
  func.func @transform_4(%arg0: i32) -> (i32, i32, i32) {
    %c0_i32 = arith.constant 0 : i32
    %c0_i32_0 = arith.constant 0 : i32
    %c0_i32_1 = arith.constant 0 : i32
    %c0_i32_2 = arith.constant 0 : i32
    return %c0_i32, %c0_i32_0, %c0_i32_1 : i32, i32, i32
  }
  func.func @transform_5(%arg0: i32) -> (i32, i32, i32) {
    %c0_i32 = arith.constant 0 : i32
    %c0_i32_0 = arith.constant 0 : i32
    %c0_i32_1 = arith.constant 0 : i32
    %c0_i32_2 = arith.constant 0 : i32
    return %c0_i32, %c0_i32_0, %c0_i32_1 : i32, i32, i32
  }
  func.func @transform_6(%arg0: i32) -> (i32, i32, i32) {
    %c0_i32 = arith.constant 0 : i32
    %c0_i32_0 = arith.constant 0 : i32
    %c0_i32_1 = arith.constant 0 : i32
    %c0_i32_2 = arith.constant 0 : i32
    return %c0_i32, %c0_i32_0, %c0_i32_1 : i32, i32, i32
  }
  func.func @transform_7(%arg0: i32) -> (i32, i32) {
    %c0_i32 = arith.constant 0 : i32
    %c0_i32_0 = arith.constant 0 : i32
    %c0_i32_1 = arith.constant 0 : i32
    return %c0_i32, %c0_i32_0 : i32, i32
  }
  func.func @transform_8(%arg0: i32) -> (i32, i32) {
    %c0_i32 = arith.constant 0 : i32
    %c0_i32_0 = arith.constant 0 : i32
    %c0_i32_1 = arith.constant 0 : i32
    return %c0_i32, %c0_i32_0 : i32, i32
  }
  func.func @transform_9(%arg0: i32) -> (i32, i32, i32) {
    %c0_i32 = arith.constant 0 : i32
    %c0_i32_0 = arith.constant 0 : i32
    %c0_i32_1 = arith.constant 0 : i32
    return %arg0, %c0_i32, %c0_i32_0 : i32, i32, i32
  }
  func.func @transform_10(%arg0: i32) -> (i32, i32, i32) {
    %c0_i32 = arith.constant 0 : i32
    %c0_i32_0 = arith.constant 0 : i32
    %c0_i32_1 = arith.constant 0 : i32
    %c0_i32_2 = arith.constant 0 : i32
    return %c0_i32, %c0_i32_0, %c0_i32_1 : i32, i32, i32
  }
  func.func @transform_11(%arg0: i32) -> (i32, i32, i32) {
    %c0_i32 = arith.constant 0 : i32
    %c0_i32_0 = arith.constant 0 : i32
    %c0_i32_1 = arith.constant 0 : i32
    %c0_i32_2 = arith.constant 0 : i32
    return %c0_i32, %c0_i32_0, %c0_i32_1 : i32, i32, i32
  }
}

</mosaic_0001>

<llo_original>
// kernel: decoder_forward.1
$region0: #{decoder_forward.1}
  #allocation0 [shape = 'u32[]', space=smem, size = 0x4, offset = 0x4, fixed_abs, tag = 'smem constant byte address 0x4 - core index']
  #allocation1 [shape = 'u32[72,128]{1,0:T(1,128)}', space=vmem, size = 0x9000, scoped, tag = 'internal scratch']
  %s0 = inlined_call_operand.vmem [shape: s32[6,8,1], index: 0, kind: input, shape index: {}]
  %s1 = inlined_call_operand.vmem [shape: f32[64,32], index: 1, kind: input, shape index: {}]
  %s2 = inlined_call_operand.vmem [shape: f32[2,8,32], index: 2, kind: input, shape index: {}]
  %s3 = inlined_call_operand.hbm [shape: f32[2,8,32], index: 3, kind: input, shape index: {}]
  %s4 = inlined_call_operand.vmem [shape: f32[2,32,128], index: 4, kind: input, shape index: {}]
  %s5 = inlined_call_operand.hbm [shape: f32[2,32,128], index: 5, kind: input, shape index: {}]
  %s6 = inlined_call_operand.vmem [shape: f32[2,1,128], index: 6, kind: input, shape index: {}]
  %s7 = inlined_call_operand.vmem [shape: f32[32,128], index: 7, kind: input, shape index: {}]
  %s8 = inlined_call_operand.vmem [shape: f32[1,128], index: 8, kind: input, shape index: {}]
  %s9 = inlined_call_operand.hbm [shape: f32[6,8,128], index: 9, kind: output, shape index: {0}]
  %s10 = inlined_call_operand.hbm [shape: f32[2,8,32], index: 10, kind: output, shape index: {1}]
  %s11 = inlined_call_operand.hbm [shape: f32[2,8,32], index: 11, kind: output, shape index: {2}]
  %12 = xla_tuple %s9, %s10, %s11
  %s13 = sld [smem:[#allocation0]]
  $region97: #{decoder_forward.1} parent=0
    _
  %s15 = ssub.s32 1, %s13
  %s16 = scalar_select 0, %s15, %s13
  $region1: #{decoder_forward.1} parent=0
    #allocation2 [shape = 'u8[8192]{0}', space=vmem, size = 0x2000, scoped, tag = 'input window, operand 3, single buffered']
    #allocation3 [shape = 's32[2]{0}', space=sflag, size = 0x8, scoped, tag = 'scoped memory for decoder_forward.1']
    #allocation4 [shape = 's32[2]{0}', space=sflag, size = 0x8, scoped, tag = 'scoped memory for decoder_forward.1']
    #allocation5 [shape = 'u8[32768]{0}', space=vmem, size = 0x8000, scoped, tag = 'input window, operand 5, single buffered']
    #allocation6 [shape = 's32[1]{0}', space=sflag, size = 0x4, scoped, tag = 'scoped memory for decoder_forward.1']
    #allocation7 [shape = 'u8[8192]{0}', space=vmem, size = 0x2000, scoped, tag = 'output window, operand 0']
    #allocation8 [shape = 'u8[8192]{0}', space=vmem, size = 0x2000, scoped, tag = 'output window, operand 1, single buffered']
    #allocation9 [shape = 's32[1]{0}', space=sflag, size = 0x4, scoped, tag = 'scoped memory for decoder_forward.1']
    #allocation10 [shape = 'u8[8192]{0}', space=vmem, size = 0x2000, scoped, tag = 'output window, operand 2, single buffered']
    %17 = vsyncpa [#allocation3], 0
    %18 = vsyncpa [#allocation6], 0
    %19 = vsyncpa [#allocation4], 0
    %s20 = scalar_lea.sflag [#allocation4], 1
    %21 = vsyncpa %s20, 0
    %22 = vsyncpa [#allocation9], 0
    loop: start=0, step=1, limit=8
    $region2: #{decoder_forward.1} parent=1 // loop_pre_header
      _
    $region3: #{decoder_forward.1} parent=1 // loop_header
      %s24 = sphi 0, %s28
      %p25 = scmp.ge.s32.totalorder %s24, 8
      %s34 = sphi 0, %s36
      %s37 = sphi 0, %s34
      %s38 = sphi 0, %s37
      %s54 = sphi 0, %s38
      %s58 = sphi 0, %s58
      %s60 = sphi 0, %s58
      %s61 = sphi 0, %s60
      %s75 = sphi 0, %s61
      %s79 = sphi 0, %s79
      %s81 = sphi 0, %s79
      %s82 = sphi 0, %s81
      %s96 = sphi 0, %s82
      %s100 = sphi 0, %s100
      %s102 = sphi 0, %s100
      %s103 = sphi 0, %s102
      %s117 = sphi 0, %s103
      %s121 = sphi 0, %s121
      %s123 = sphi 0, %s121
      %s124 = sphi 0, %s123
      %s138 = sphi 0, %s124
      %s142 = sphi 0, %s142
      %s144 = sphi 0, %s142
      %s145 = sphi 0, %s144
      %s159 = sphi 0, %s145
      %s163 = sphi 0, %s163
      %s165 = sphi 0, %s163
      %s166 = sphi 0, %s165
      %s180 = sphi 0, %s166
      %s184 = sphi 0, %s184
      %s186 = sphi 0, %s184
      %s187 = sphi 0, %s186
      %s201 = sphi 0, %s187
      %s205 = sphi 0, %s205
      %s207 = sphi 0, %s205
      %s208 = sphi 0, %s207
      %s222 = sphi 0, %s208
      %s228 = sphi 0, %s230
      %s231 = sphi 0, %s228
      %s232 = sphi 0, %s231
      %s248 = sphi 0, %s232
      %s252 = sphi 0, %s252
      %s254 = sphi 0, %s252
      %s255 = sphi 0, %s254
      %s269 = sphi 0, %s255
      %s273 = sphi 0, %s273
      %s275 = sphi 0, %s273
      %s276 = sphi 0, %s275
      %s290 = sphi 0, %s276
    $region4: #{decoder_forward.1} parent=1 // loop_header_branch
      %27 = sbr.rel (%p25) target = $region8
    $region5: #{decoder_forward.1} parent=1 // loop_body
      %s29 = ssub.s32 %s24, 1
      %s30 = ssub.s32 %s24, 2
      %s31 = sadd.s32 %s24, 1
      %s32 = ssub.s32 %s24, %s31
      %p33 = scmp.eq.s32.totalorder %s32, 0
      %s35 = sadd.s32 %s34, 1
      %s36 = scalar_select %p33, %s34, %s35
      %p39 = pneg %p33
      %p40 = scmp.eq.s32.totalorder %s24, 5
      %p41 = por %p39, %p40
      %p42 = scmp.ne.s32.totalorder %s34, %s37
      %p43 = scmp.eq.s32.totalorder %s24, 0
      %p44 = por %p42, %p43
      %p45 = scmp.ne.s32.totalorder %s34, %s37
      %p46 = scmp.eq.s32.totalorder %s29, 5
      %p47 = por %p45, %p46
      %p48 = scmp.ne.s32.totalorder %s37, %s38
      %p49 = scmp.eq.s32.totalorder %s29, 0
      %p50 = por %p48, %p49
      %p51 = scmp.ne.s32.totalorder %s37, %s38
      %p52 = scmp.eq.s32.totalorder %s30, 5
      %p53 = por %p51, %p52
      %p55 = scmp.ne.s32.totalorder %s38, %s54
      %p56 = scmp.eq.s32.totalorder %s30, 0
      %p57 = por %p55, %p56
      %s59 = sadd.s32 %s58, 1
      %p62 = scmp.eq.s32.totalorder %s24, 5
      %p63 = scmp.ne.s32.totalorder %s58, %s60
      %p64 = scmp.eq.s32.totalorder %s24, 0
      %p65 = por %p63, %p64
      %p66 = scmp.ne.s32.totalorder %s58, %s60
      %p67 = scmp.eq.s32.totalorder %s29, 5
      %p68 = por %p66, %p67
      %p69 = scmp.ne.s32.totalorder %s60, %s61
      %p70 = scmp.eq.s32.totalorder %s29, 0
      %p71 = por %p69, %p70
      %p72 = scmp.ne.s32.totalorder %s60, %s61
      %p73 = scmp.eq.s32.totalorder %s30, 5
      %p74 = por %p72, %p73
      %p76 = scmp.ne.s32.totalorder %s61, %s75
      %p77 = scmp.eq.s32.totalorder %s30, 0
      %p78 = por %p76, %p77
      %s80 = sadd.s32 %s79, 1
      %p83 = scmp.eq.s32.totalorder %s24, 5
      %p84 = scmp.ne.s32.totalorder %s79, %s81
      %p85 = scmp.eq.s32.totalorder %s24, 0
      %p86 = por %p84, %p85
      %p87 = scmp.ne.s32.totalorder %s79, %s81
      %p88 = scmp.eq.s32.totalorder %s29, 5
      %p89 = por %p87, %p88
      %p90 = scmp.ne.s32.totalorder %s81, %s82
      %p91 = scmp.eq.s32.totalorder %s29, 0
      %p92 = por %p90, %p91
      %p93 = scmp.ne.s32.totalorder %s81, %s82
      %p94 = scmp.eq.s32.totalorder %s30, 5
      %p95 = por %p93, %p94
      %p97 = scmp.ne.s32.totalorder %s82, %s96
      %p98 = scmp.eq.s32.totalorder %s30, 0
      %p99 = por %p97, %p98
      %s101 = sadd.s32 %s100, 1
      %p104 = scmp.eq.s32.totalorder %s24, 5
      %p105 = scmp.ne.s32.totalorder %s100, %s102
      %p106 = scmp.eq.s32.totalorder %s24, 0
      %p107 = por %p105, %p106
      %p108 = scmp.ne.s32.totalorder %s100, %s102
      %p109 = scmp.eq.s32.totalorder %s29, 5
      %p110 = por %p108, %p109
      %p111 = scmp.ne.s32.totalorder %s102, %s103
      %p112 = scmp.eq.s32.totalorder %s29, 0
      %p113 = por %p111, %p112
      %p114 = scmp.ne.s32.totalorder %s102, %s103
      %p115 = scmp.eq.s32.totalorder %s30, 5
      %p116 = por %p114, %p115
      %p118 = scmp.ne.s32.totalorder %s103, %s117
      %p119 = scmp.eq.s32.totalorder %s30, 0
      %p120 = por %p118, %p119
      %s122 = sadd.s32 %s121, 1
      %p125 = scmp.eq.s32.totalorder %s24, 5
      %p126 = scmp.ne.s32.totalorder %s121, %s123
      %p127 = scmp.eq.s32.totalorder %s24, 0
      %p128 = por %p126, %p127
      %p129 = scmp.ne.s32.totalorder %s121, %s123
      %p130 = scmp.eq.s32.totalorder %s29, 5
      %p131 = por %p129, %p130
      %p132 = scmp.ne.s32.totalorder %s123, %s124
      %p133 = scmp.eq.s32.totalorder %s29, 0
      %p134 = por %p132, %p133
      %p135 = scmp.ne.s32.totalorder %s123, %s124
      %p136 = scmp.eq.s32.totalorder %s30, 5
      %p137 = por %p135, %p136
      %p139 = scmp.ne.s32.totalorder %s124, %s138
      %p140 = scmp.eq.s32.totalorder %s30, 0
      %p141 = por %p139, %p140
      %s143 = sadd.s32 %s142, 1
      %p146 = scmp.eq.s32.totalorder %s24, 5
      %p147 = scmp.ne.s32.totalorder %s142, %s144
      %p148 = scmp.eq.s32.totalorder %s24, 0
      %p149 = por %p147, %p148
      %p150 = scmp.ne.s32.totalorder %s142, %s144
      %p151 = scmp.eq.s32.totalorder %s29, 5
      %p152 = por %p150, %p151
      %p153 = scmp.ne.s32.totalorder %s144, %s145
      %p154 = scmp.eq.s32.totalorder %s29, 0
      %p155 = por %p153, %p154
      %p156 = scmp.ne.s32.totalorder %s144, %s145
      %p157 = scmp.eq.s32.totalorder %s30, 5
      %p158 = por %p156, %p157
      %p160 = scmp.ne.s32.totalorder %s145, %s159
      %p161 = scmp.eq.s32.totalorder %s30, 0
      %p162 = por %p160, %p161
      %s164 = sadd.s32 %s163, 1
      %p167 = scmp.eq.s32.totalorder %s24, 5
      %p168 = scmp.ne.s32.totalorder %s163, %s165
      %p169 = scmp.eq.s32.totalorder %s24, 0
      %p170 = por %p168, %p169
      %p171 = scmp.ne.s32.totalorder %s163, %s165
      %p172 = scmp.eq.s32.totalorder %s29, 5
      %p173 = por %p171, %p172
      %p174 = scmp.ne.s32.totalorder %s165, %s166
      %p175 = scmp.eq.s32.totalorder %s29, 0
      %p176 = por %p174, %p175
      %p177 = scmp.ne.s32.totalorder %s165, %s166
      %p178 = scmp.eq.s32.totalorder %s30, 5
      %p179 = por %p177, %p178
      %p181 = scmp.ne.s32.totalorder %s166, %s180
      %p182 = scmp.eq.s32.totalorder %s30, 0
      %p183 = por %p181, %p182
      %s185 = sadd.s32 %s184, 1
      %p188 = scmp.eq.s32.totalorder %s24, 5
      %p189 = scmp.ne.s32.totalorder %s184, %s186
      %p190 = scmp.eq.s32.totalorder %s24, 0
      %p191 = por %p189, %p190
      %p192 = scmp.ne.s32.totalorder %s184, %s186
      %p193 = scmp.eq.s32.totalorder %s29, 5
      %p194 = por %p192, %p193
      %p195 = scmp.ne.s32.totalorder %s186, %s187
      %p196 = scmp.eq.s32.totalorder %s29, 0
      %p197 = por %p195, %p196
      %p198 = scmp.ne.s32.totalorder %s186, %s187
      %p199 = scmp.eq.s32.totalorder %s30, 5
      %p200 = por %p198, %p199
      %p202 = scmp.ne.s32.totalorder %s187, %s201
      %p203 = scmp.eq.s32.totalorder %s30, 0
      %p204 = por %p202, %p203
      %s206 = sadd.s32 %s205, 1
      %p209 = scmp.eq.s32.totalorder %s24, 5
      %p210 = scmp.ne.s32.totalorder %s205, %s207
      %p211 = scmp.eq.s32.totalorder %s24, 0
      %p212 = por %p210, %p211
      %p213 = scmp.ne.s32.totalorder %s205, %s207
      %p214 = scmp.eq.s32.totalorder %s29, 5
      %p215 = por %p213, %p214
      %p216 = scmp.ne.s32.totalorder %s207, %s208
      %p217 = scmp.eq.s32.totalorder %s29, 0
      %p218 = por %p216, %p217
      %p219 = scmp.ne.s32.totalorder %s207, %s208
      %p220 = scmp.eq.s32.totalorder %s30, 5
      %p221 = por %p219, %p220
      %p223 = scmp.ne.s32.totalorder %s208, %s222
      %p224 = scmp.eq.s32.totalorder %s30, 0
      %p225 = por %p223, %p224
      %s226 = ssub.s32 %s24, %s31
      %p227 = scmp.eq.s32.totalorder %s226, 0
      %s229 = sadd.s32 %s228, 1
      %s230 = scalar_select %p227, %s228, %s229
      %p233 = pneg %p227
      %p234 = scmp.eq.s32.totalorder %s24, 5
      %p235 = por %p233, %p234
      %p236 = scmp.ne.s32.totalorder %s228, %s231
      %p237 = scmp.eq.s32.totalorder %s24, 0
      %p238 = por %p236, %p237
      %p239 = scmp.ne.s32.totalorder %s228, %s231
      %p240 = scmp.eq.s32.totalorder %s29, 5
      %p241 = por %p239, %p240
      %p242 = scmp.ne.s32.totalorder %s231, %s232
      %p243 = scmp.eq.s32.totalorder %s29, 0
      %p244 = por %p242, %p243
      %p245 = scmp.ne.s32.totalorder %s231, %s232
      %p246 = scmp.eq.s32.totalorder %s30, 5
      %p247 = por %p245, %p246
      %p249 = scmp.ne.s32.totalorder %s232, %s248
      %p250 = scmp.eq.s32.totalorder %s30, 0
      %p251 = por %p249, %p250
      %s253 = sadd.s32 %s252, 1
      %p256 = scmp.eq.s32.totalorder %s24, 5
      %p257 = scmp.ne.s32.totalorder %s252, %s254
      %p258 = scmp.eq.s32.totalorder %s24, 0
      %p259 = por %p257, %p258
      %p260 = scmp.ne.s32.totalorder %s252, %s254
      %p261 = scmp.eq.s32.totalorder %s29, 5
      %p262 = por %p260, %p261
      %p263 = scmp.ne.s32.totalorder %s254, %s255
      %p264 = scmp.eq.s32.totalorder %s29, 0
      %p265 = por %p263, %p264
      %p266 = scmp.ne.s32.totalorder %s254, %s255
      %p267 = scmp.eq.s32.totalorder %s30, 5
      %p268 = por %p266, %p267
      %p270 = scmp.ne.s32.totalorder %s255, %s269
      %p271 = scmp.eq.s32.totalorder %s30, 0
      %p272 = por %p270, %p271
      %s274 = sadd.s32 %s273, 1
      %p277 = scmp.eq.s32.totalorder %s24, 5
      %p278 = scmp.ne.s32.totalorder %s273, %s275
      %p279 = scmp.eq.s32.totalorder %s24, 0
      %p280 = por %p278, %p279
      %p281 = scmp.ne.s32.totalorder %s273, %s275
      %p282 = scmp.eq.s32.totalorder %s29, 5
      %p283 = por %p281, %p282
      %p284 = scmp.ne.s32.totalorder %s275, %s276
      %p285 = scmp.eq.s32.totalorder %s29, 0
      %p286 = por %p284, %p285
      %p287 = scmp.ne.s32.totalorder %s275, %s276
      %p288 = scmp.eq.s32.totalorder %s30, 5
      %p289 = por %p287, %p288
      %p291 = scmp.ne.s32.totalorder %s276, %s290
      %p292 = scmp.eq.s32.totalorder %s30, 0
      %p293 = por %p291, %p292
      %p294 = scmp.le.s32.totalorder 1, %s24
      %p295 = scmp.lt.s32.totalorder %s24, 7
      %p296 = pnand %p294, %p295
      %p297 = pneg %p296
      // Predicated region
      $region9: #{decoder_forward.1} parent=5 // pred_check
        _
      $region10: #{decoder_forward.1} parent=5 // pred_check_branch
        %299 = sbr.rel (%p296) target = $region12
      $region11: #{decoder_forward.1} parent=5 // pred_region
        %s300 = ssub.s32 %s24, 1
        // Predicated region
        $region13: #{decoder_forward.1} parent=11 // pred_check
          %p301 = pneg %p71
        $region14: #{decoder_forward.1} parent=11 // pred_check_branch
          %303 = sbr.rel (%p301) target = $region16
        $region15: #{decoder_forward.1} parent=11 // pred_region
          _
        $region16: #{decoder_forward.1} parent=11 // pred_fallthru
          _
        // Predicated region
        $region17: #{decoder_forward.1} parent=11 // pred_check
          %p304 = pneg %p92
        $region18: #{decoder_forward.1} parent=11 // pred_check_branch
          %306 = sbr.rel (%p304) target = $region20
        $region19: #{decoder_forward.1} parent=11 // pred_region
          _
        $region20: #{decoder_forward.1} parent=11 // pred_fallthru
          _
        // Predicated region
        $region21: #{decoder_forward.1} parent=11 // pred_check
          %p307 = pneg %p113
        $region22: #{decoder_forward.1} parent=11 // pred_check_branch
          %309 = sbr.rel (%p307) target = $region24
        $region23: #{decoder_forward.1} parent=11 // pred_region
          %311 = vsyncadd [#allocation3], 0
          %s312 = sshll.u32 %s3, 4
          %s313 = int_to_ptr.hbm [resolvable:$true] %s312
          %s314 = sshll.u32 [#allocation2], 4
          %s315 = int_to_ptr.vmem [resolvable:$true] %s314
          %320 = dma.hbm_to_vmem [thread:$0]  %s313, 256, %s315, [#allocation3], 128, 128, 8
        $region24: #{decoder_forward.1} parent=11 // pred_fallthru
          _
        // Predicated region
        $region25: #{decoder_forward.1} parent=11 // pred_check
          %p321 = pneg %p134
        $region26: #{decoder_forward.1} parent=11 // pred_check_branch
          %323 = sbr.rel (%p321) target = $region28
        $region27: #{decoder_forward.1} parent=11 // pred_region
          _
        $region28: #{decoder_forward.1} parent=11 // pred_fallthru
          _
        // Predicated region
        $region29: #{decoder_forward.1} parent=11 // pred_check
          %p324 = pneg %p155
        $region30: #{decoder_forward.1} parent=11 // pred_check_branch
          %326 = sbr.rel (%p324) target = $region32
        $region31: #{decoder_forward.1} parent=11 // pred_region
          %328 = vsyncadd [#allocation6], 0
          %s329 = sshll.u32 %s5, 4
          %s330 = int_to_ptr.hbm [resolvable:$true] %s329
          %s331 = sshll.u32 [#allocation5], 4
          %s332 = int_to_ptr.vmem [resolvable:$true] %s331
          %337 = dma.hbm_to_vmem [thread:$0]  %s330, 1024, %s332, [#allocation6], 128, 128, 8
        $region32: #{decoder_forward.1} parent=11 // pred_fallthru
          _
        // Predicated region
        $region33: #{decoder_forward.1} parent=11 // pred_check
          %p338 = pneg %p176
        $region34: #{decoder_forward.1} parent=11 // pred_check_branch
          %340 = sbr.rel (%p338) target = $region36
        $region35: #{decoder_forward.1} parent=11 // pred_region
          _
        $region36: #{decoder_forward.1} parent=11 // pred_fallthru
          _
        // Predicated region
        $region37: #{decoder_forward.1} parent=11 // pred_check
          %p341 = pneg %p197
        $region38: #{decoder_forward.1} parent=11 // pred_check_branch
          %343 = sbr.rel (%p341) target = $region40
        $region39: #{decoder_forward.1} parent=11 // pred_region
          _
        $region40: #{decoder_forward.1} parent=11 // pred_fallthru
          _
        // Predicated region
        $region41: #{decoder_forward.1} parent=11 // pred_check
          %p344 = pneg %p218
        $region42: #{decoder_forward.1} parent=11 // pred_check_branch
          %346 = sbr.rel (%p344) target = $region44
        $region43: #{decoder_forward.1} parent=11 // pred_region
          _
        $region44: #{decoder_forward.1} parent=11 // pred_fallthru
          _
      $region12: #{decoder_forward.1} parent=5 // pred_fallthru
        _
      %p347 = scmp.lt.s32.totalorder %s24, 6
      // Predicated region
      $region45: #{decoder_forward.1} parent=5 // pred_check
        %p348 = pneg %p347
      $region46: #{decoder_forward.1} parent=5 // pred_check_branch
        %350 = sbr.rel (%p348) target = $region48
      $region47: #{decoder_forward.1} parent=5 // pred_region
        // Predicated region
        $region49: #{decoder_forward.1} parent=47 // pred_check
          %p351 = pneg %p44
        $region50: #{decoder_forward.1} parent=47 // pred_check_branch
          %353 = sbr.rel (%p351) target = $region52
        $region51: #{decoder_forward.1} parent=47 // pred_region
          %p354 = scmp.lt.s32.totalorder %s24, 5
          %s355 = scalar_select %p354, %s24, 5
          %s356 = smul.addr %s355, 8
          %s357 = scalar_lea.vmem %s0, %s356
        $region52: #{decoder_forward.1} parent=47 // pred_fallthru
          _
      $region48: #{decoder_forward.1} parent=5 // pred_fallthru
        _
      %p358 = scmp.le.s32.totalorder 1, %s24
      %p359 = scmp.lt.s32.totalorder %s24, 7
      %p360 = pnand %p358, %p359
      %p361 = pneg %p360
      // Predicated region
      $region53: #{decoder_forward.1} parent=5 // pred_check
        _
      $region54: #{decoder_forward.1} parent=5 // pred_check_branch
        %363 = sbr.rel (%p360) target = $region56
      $region55: #{decoder_forward.1} parent=5 // pred_region
        %s364 = ssub.s32 %s24, 1
        // Predicated region
        $region57: #{decoder_forward.1} parent=55 // pred_check
          %p365 = pneg %p113
        $region58: #{decoder_forward.1} parent=55 // pred_check_branch
          %367 = sbr.rel (%p365) target = $region60
        $region59: #{decoder_forward.1} parent=55 // pred_region
          %369 = dma.done [#allocation3], 256
        $region60: #{decoder_forward.1} parent=55 // pred_fallthru
          _
        // Predicated region
        $region61: #{decoder_forward.1} parent=55 // pred_check
          %p370 = pneg %p155
        $region62: #{decoder_forward.1} parent=55 // pred_check_branch
          %372 = sbr.rel (%p370) target = $region64
        $region63: #{decoder_forward.1} parent=55 // pred_region
          %374 = dma.done [#allocation6], 1024
        $region64: #{decoder_forward.1} parent=55 // pred_fallthru
          _
        %p375 = scmp.lt.s32.totalorder %s29, 5
        %s376 = scalar_select %p375, %s29, 5
        %s377 = smul.addr %s376, 8
        %s378 = scalar_lea.vmem %s0, %s377
        %p379 = pneg %p50
        %p380 = pneg %p47
        %p381 = pneg %p71
        %p382 = pneg %p68
        %p383 = pneg %p92
        %p384 = pneg %p89
        %p385 = pneg %p113
        %p386 = pneg %p110
        %p387 = pneg %p134
        %p388 = pneg %p131
        %p389 = pneg %p155
        %p390 = pneg %p152
        %p391 = pneg %p176
        %p392 = pneg %p173
        %p393 = pneg %p197
        %p394 = pneg %p194
        %p395 = pneg %p218
        %p396 = pneg %p215
        %p397 = pneg %p244
        %p398 = pneg %p241
        %s399 = sand.u32 %s231, 1
        %s400 = scalar_lea.sflag [#allocation4], %s399
        %s401 = sand.u32 %s231, 1
        %s402 = smul.addr %s401, 8
        %s403 = scalar_lea.vmem [#allocation7], %s402
        %p404 = pneg %p265
        %p405 = pneg %p262
        %p406 = pneg %p286
        %p407 = pneg %p283
        %p408 = scmp.lt.s32.totalorder %s29, 5
        %s409 = scalar_select %p408, %s29, 5
        %s410 = smul.addr %s409, 8
        %s411 = scalar_lea.vmem %s0, %s410
        %p412 = scmp.eq.s32.totalorder %s29, 0
        // Predicated region
        $region65: #{decoder_forward.1} parent=55 // pred_check
          %p413 = pneg %p412
        $region66: #{decoder_forward.1} parent=55 // pred_check_branch
          %415 = sbr.rel (%p413) target = $region68
        $region67: #{decoder_forward.1} parent=55 // pred_region
          %v416 = vld [vmem:[%s2] sm:$0xff]
          %v417 = vld [vmem:[%s2 + $0x8] sm:$0xff]
          %vm418 = vcmask 261120
          %419 = vst.msk [vmem:[#allocation8] sm:$0xff] %vm418, %v416
          %420 = vst.msk [vmem:[#allocation8 + $0x8] sm:$0xff] %vm418, %v417
          %v421 = vld [vmem:[#allocation2] sm:$0xff]
          %v422 = vld [vmem:[#allocation2 + $0x8] sm:$0xff]
          %423 = vst.msk [vmem:[#allocation10] sm:$0xff] %vm418, %v421
          %424 = vst.msk [vmem:[#allocation10 + $0x8] sm:$0xff] %vm418, %v422
        $region68: #{decoder_forward.1} parent=55 // pred_fallthru
          _
        %v425 = vld [vmem:[%s411] sm:$0xff]
        %v426 = vlaneseq
        %v427 = vand.u32 %v426, 127
        %428 = vset.pattern.permute.xlu0 0
        %429 = vperm.xlu0 %428, %v425
        %v430 = vpop.permute.xlu0 %429
        %vm431 = vcmp.eq.s32.totalorder %v430, %v427
        %v432 = vsel %vm431, 1, 0
        %v433 = vcvt.s32.f32 %v432
        %v434 = vld [vmem:[%s1] sm:$0xff]
        %v435 = vld [vmem:[%s1 + $0x8] sm:$0xff]
        %v436 = vld [vmem:[%s1 + $0x10] sm:$0xff]
        %v437 = vld [vmem:[%s1 + $0x18] sm:$0xff]
        %v438 = vld [vmem:[%s1 + $0x20] sm:$0xff]
        %v439 = vld [vmem:[%s1 + $0x28] sm:$0xff]
        %v440 = vld [vmem:[%s1 + $0x30] sm:$0xff]
        %v441 = vld [vmem:[%s1 + $0x38] sm:$0xff]
        %vm442 = vcmask 523264
        %v444 = vsel %vm442, %v433, 0
        %446 = vmatpush.msra.mxu0 0.0
        %447 = vmatpush.msra.mxu0 0.0
        %448 = vmatpush.msra.mxu0 0.0
        %449 = vmatpush.msra.mxu0 0.0
        %450 = vmatpush.msra.mxu0 0.0
        %451 = vmatpush.msra.mxu0 0.0
        %452 = vmatpush.msra.mxu0 0.0
        %453 = vmatpush.msra.mxu0 0.0
        %454 = vmatpush.msra.mxu0 %v441
        %455 = vmatpush.msra.mxu0 %v440
        %456 = vmatpush.msra.mxu0 %v439
        %457 = vmatpush.msra.mxu0 %v438
        %458 = vmatpush.msra.mxu0 %v437
        %459 = vmatpush.msra.mxu0 %v436
        %460 = vmatpush.msra.mxu0 %v435
        %461 = vmatpush.msra.mxu0 %v434
        %462 = vmatmul.f32.gmra.mxu0 %v444
        %v463 = vpop.f32.mrf.mxu0
        %v464 = vadd.f32 0.0, %v463
        %465 = vdwg.mxu0
        %v466 = vld [vmem:[#allocation8] sm:$0xff]
        %v467 = vld [vmem:[#allocation10] sm:$0xff]
        %v468 = vld [vmem:[%s4] sm:$0xff]
        %v469 = vld [vmem:[%s4 + $0x8] sm:$0xff]
        %v470 = vld [vmem:[%s4 + $0x10] sm:$0xff]
        %v471 = vld [vmem:[%s4 + $0x18] sm:$0xff]
        %v472 = vld [vmem:[#allocation5] sm:$0xff]
        %v473 = vld [vmem:[#allocation5 + $0x8] sm:$0xff]
        %v474 = vld [vmem:[#allocation5 + $0x10] sm:$0xff]
        %v475 = vld [vmem:[#allocation5 + $0x18] sm:$0xff]
        %vm476 = vcmask 261120
        %v478 = vsel %vm476, %v466, 0
        %480 = vmatpush.msra.mxu0 0.0
        %481 = vmatpush.msra.mxu0 0.0
        %482 = vmatpush.msra.mxu0 0.0
        %483 = vmatpush.msra.mxu0 0.0
        %484 = vmatpush.msra.mxu0 0.0
        %485 = vmatpush.msra.mxu0 0.0
        %486 = vmatpush.msra.mxu0 0.0
        %487 = vmatpush.msra.mxu0 0.0
        %488 = vmatpush.msra.mxu0 0.0
        %489 = vmatpush.msra.mxu0 0.0
        %490 = vmatpush.msra.mxu0 0.0
        %491 = vmatpush.msra.mxu0 0.0
        %492 = vmatpush.msra.mxu0 %v475
        %493 = vmatpush.msra.mxu0 %v474
        %494 = vmatpush.msra.mxu0 %v473
        %495 = vmatpush.msra.mxu0 %v472
        %496 = vmatmul.f32.gmra.mxu0 %v478
        %v497 = vpop.f32.mrf.mxu0
        %v498 = vadd.f32 0.0, %v497
        %499 = vdwg.mxu0
        %v501 = vsel %vm476, %v464, 0
        %503 = vmatpush.msra.mxu0 0.0
        %504 = vmatpush.msra.mxu0 0.0
        %505 = vmatpush.msra.mxu0 0.0
        %506 = vmatpush.msra.mxu0 0.0
        %507 = vmatpush.msra.mxu0 0.0
        %508 = vmatpush.msra.mxu0 0.0
        %509 = vmatpush.msra.mxu0 0.0
        %510 = vmatpush.msra.mxu0 0.0
        %511 = vmatpush.msra.mxu0 0.0
        %512 = vmatpush.msra.mxu0 0.0
        %513 = vmatpush.msra.mxu0 0.0
        %514 = vmatpush.msra.mxu0 0.0
        %515 = vmatpush.msra.mxu0 %v471
        %516 = vmatpush.msra.mxu0 %v470
        %517 = vmatpush.msra.mxu0 %v469
        %518 = vmatpush.msra.mxu0 %v468
        %519 = vmatmul.f32.gmra.mxu0 %v501
        %v520 = vpop.f32.mrf.mxu0
        %v521 = vadd.f32 %v498, %v520
        %522 = vdwg.mxu0
        %v523 = vld [vmem:[%s6] sm:$0x1]
        %v525 = vperm.slane %v523, 0
        %v527 = vadd.f32 %v521, %v525
        %v528 = vmul.f32 %v527, 0.5
        %v529 = vtanh.pop %v528
        %v530 = vadd.f32 %v529, 1.0
        %v531 = vmul.f32 %v530, 0.5
        %533 = vrot.lane.b32.xlu0 %v467, 32
        %v534 = vpop.permute.xlu0 %533
        %v536 = vmul.f32 %v531, %v534
        %538 = vrot.lane.b32.xlu0 %v529, 64
        %v539 = vpop.permute.xlu0 %538
        %v541 = vmul.f32 %v531, %v539
        %543 = vrot.lane.b32.xlu0 %v541, 32
        %v544 = vpop.permute.xlu0 %543
        %v546 = vadd.f32 %v536, %v544
        %v547 = vtanh.pop %v546
        %549 = vrot.lane.b32.xlu0 %v547, 64
        %v550 = vpop.permute.xlu0 %549
        %v552 = vmul.f32 %v531, %v550
        %554 = vrot.lane.b32.xlu0 %v552, 32
        %v555 = vpop.permute.xlu0 %554
        %557 = vst.msk [vmem:[#allocation8] sm:$0xff] %vm476, %v555
        %559 = vrot.lane.b32.xlu0 %v546, 96
        %v560 = vpop.permute.xlu0 %559
        %562 = vst.msk [vmem:[#allocation10] sm:$0xff] %vm476, %v560
        %s563 = scalar_lea.vmem [#allocation8], 8
        %v564 = vld [vmem:[%s563] sm:$0xff]
        %s565 = scalar_lea.vmem [#allocation10], 8
        %v566 = vld [vmem:[%s565] sm:$0xff]
        %s567 = scalar_lea.vmem %s4, 32
        %v568 = vld [vmem:[%s567] sm:$0xff]
        %v569 = vld [vmem:[%s567 + $0x8] sm:$0xff]
        %v570 = vld [vmem:[%s567 + $0x10] sm:$0xff]
        %v571 = vld [vmem:[%s567 + $0x18] sm:$0xff]
        %s572 = scalar_lea.vmem [#allocation5], 32
        %v573 = vld [vmem:[%s572] sm:$0xff]
        %v574 = vld [vmem:[%s572 + $0x8] sm:$0xff]
        %v575 = vld [vmem:[%s572 + $0x10] sm:$0xff]
        %v576 = vld [vmem:[%s572 + $0x18] sm:$0xff]
        %v578 = vsel %vm476, %v564, 0
        %580 = vmatpush.msra.mxu0 0.0
        %581 = vmatpush.msra.mxu0 0.0
        %582 = vmatpush.msra.mxu0 0.0
        %583 = vmatpush.msra.mxu0 0.0
        %584 = vmatpush.msra.mxu0 0.0
        %585 = vmatpush.msra.mxu0 0.0
        %586 = vmatpush.msra.mxu0 0.0
        %587 = vmatpush.msra.mxu0 0.0
        %588 = vmatpush.msra.mxu0 0.0
        %589 = vmatpush.msra.mxu0 0.0
        %590 = vmatpush.msra.mxu0 0.0
        %591 = vmatpush.msra.mxu0 0.0
        %592 = vmatpush.msra.mxu0 %v576
        %593 = vmatpush.msra.mxu0 %v575
        %594 = vmatpush.msra.mxu0 %v574
        %595 = vmatpush.msra.mxu0 %v573
        %596 = vmatmul.f32.gmra.mxu0 %v578
        %v597 = vpop.f32.mrf.mxu0
        %v598 = vadd.f32 0.0, %v597
        %599 = vdwg.mxu0
        %v600 = vsel %vm476, %v555, 0
        %602 = vmatpush.msra.mxu0 0.0
        %603 = vmatpush.msra.mxu0 0.0
        %604 = vmatpush.msra.mxu0 0.0
        %605 = vmatpush.msra.mxu0 0.0
        %606 = vmatpush.msra.mxu0 0.0
        %607 = vmatpush.msra.mxu0 0.0
        %608 = vmatpush.msra.mxu0 0.0
        %609 = vmatpush.msra.mxu0 0.0
        %610 = vmatpush.msra.mxu0 0.0
        %611 = vmatpush.msra.mxu0 0.0
        %612 = vmatpush.msra.mxu0 0.0
        %613 = vmatpush.msra.mxu0 0.0
        %614 = vmatpush.msra.mxu0 %v571
        %615 = vmatpush.msra.mxu0 %v570
        %616 = vmatpush.msra.mxu0 %v569
        %617 = vmatpush.msra.mxu0 %v568
        %618 = vmatmul.f32.gmra.mxu0 %v600
        %v619 = vpop.f32.mrf.mxu0
        %v620 = vadd.f32 %v598, %v619
        %621 = vdwg.mxu0
        %s622 = scalar_lea.vmem %s6, 1
        %v623 = vld [vmem:[%s622] sm:$0x1]
        %v625 = vperm.slane %v623, 0
        %v627 = vadd.f32 %v620, %v625
        %v628 = vmul.f32 %v627, 0.5
        %v629 = vtanh.pop %v628
        %v630 = vadd.f32 %v629, 1.0
        %v631 = vmul.f32 %v630, 0.5
        %633 = vrot.lane.b32.xlu0 %v566, 32
        %v634 = vpop.permute.xlu0 %633
        %v636 = vmul.f32 %v631, %v634
        %638 = vrot.lane.b32.xlu0 %v629, 64
        %v639 = vpop.permute.xlu0 %638
        %v641 = vmul.f32 %v631, %v639
        %643 = vrot.lane.b32.xlu0 %v641, 32
        %v644 = vpop.permute.xlu0 %643
        %v646 = vadd.f32 %v636, %v644
        %v647 = vtanh.pop %v646
        %649 = vrot.lane.b32.xlu0 %v647, 64
        %v650 = vpop.permute.xlu0 %649
        %v652 = vmul.f32 %v631, %v650
        %654 = vrot.lane.b32.xlu0 %v652, 32
        %v655 = vpop.permute.xlu0 %654
        %657 = vst.msk [vmem:[%s563] sm:$0xff] %vm476, %v655
        %659 = vrot.lane.b32.xlu0 %v646, 96
        %v660 = vpop.permute.xlu0 %659
        %662 = vst.msk [vmem:[%s565] sm:$0xff] %vm476, %v660
        %v663 = vld [vmem:[%s7] sm:$0xff]
        %v664 = vld [vmem:[%s7 + $0x8] sm:$0xff]
        %v665 = vld [vmem:[%s7 + $0x10] sm:$0xff]
        %v666 = vld [vmem:[%s7 + $0x18] sm:$0xff]
        %v667 = vld [vmem:[%s8] sm:$0x1]
        %v669 = vperm.slane %v667, 0
        %v671 = vsel %vm476, %v655, 0
        %673 = vmatpush.msra.mxu0 0.0
        %674 = vmatpush.msra.mxu0 0.0
        %675 = vmatpush.msra.mxu0 0.0
        %676 = vmatpush.msra.mxu0 0.0
        %677 = vmatpush.msra.mxu0 0.0
        %678 = vmatpush.msra.mxu0 0.0
        %679 = vmatpush.msra.mxu0 0.0
        %680 = vmatpush.msra.mxu0 0.0
        %681 = vmatpush.msra.mxu0 0.0
        %682 = vmatpush.msra.mxu0 0.0
        %683 = vmatpush.msra.mxu0 0.0
        %684 = vmatpush.msra.mxu0 0.0
        %685 = vmatpush.msra.mxu0 %v666
        %686 = vmatpush.msra.mxu0 %v665
        %687 = vmatpush.msra.mxu0 %v664
        %688 = vmatpush.msra.mxu0 %v663
        %689 = vmatmul.f32.gmra.mxu0 %v671
        %v690 = vpop.f32.mrf.mxu0
        %v691 = vadd.f32 %v669, %v690
        %692 = vdwg.mxu0
        %693 = vst [vmem:[%s403] sm:$0xff] %v691
        %s694 = sand.u32 %s231, 1
        %s695 = scalar_lea.sflag [#allocation4], %s694
        %s696 = sand.u32 %s231, 1
        %s697 = smul.addr %s696, 8
        %s698 = scalar_lea.vmem [#allocation7], %s697
        // Predicated region
        $region69: #{decoder_forward.1} parent=55 // pred_check
          %p699 = pneg %p241
        $region70: #{decoder_forward.1} parent=55 // pred_check_branch
          %701 = sbr.rel (%p699) target = $region72
        $region71: #{decoder_forward.1} parent=55 // pred_region
          %703 = vsyncadd %s695, 0
          %s704 = smul.addr %s29, 8
          %s705 = scalar_lea.hbm %s9, %s704
          %s707 = sshll.u32 %s698, 4
          %s708 = int_to_ptr.vmem [resolvable:$true] %s707
          %s709 = sshll.u32 %s705, 4
          %s710 = int_to_ptr.hbm [resolvable:$true] %s709
          %712 = dma.vmem_to_hbm [thread:$0]  %s708, 128, %s710, %s695
        $region72: #{decoder_forward.1} parent=55 // pred_fallthru
          _
        // Predicated region
        $region73: #{decoder_forward.1} parent=55 // pred_check
          %p713 = pneg %p262
        $region74: #{decoder_forward.1} parent=55 // pred_check_branch
          %715 = sbr.rel (%p713) target = $region76
        $region75: #{decoder_forward.1} parent=55 // pred_region
          %717 = vsyncadd [#allocation9], 0
          %s718 = sshll.u32 [#allocation8], 4
          %s719 = int_to_ptr.vmem [resolvable:$true] %s718
          %s720 = sshll.u32 %s10, 4
          %s721 = int_to_ptr.hbm [resolvable:$true] %s720
          %726 = dma.vmem_to_hbm [thread:$0]  %s719, 256, %s721, [#allocation9], 128, 128, 8
        $region76: #{decoder_forward.1} parent=55 // pred_fallthru
          _
        // Predicated region
        $region77: #{decoder_forward.1} parent=55 // pred_check
          %p727 = pneg %p283
        $region78: #{decoder_forward.1} parent=55 // pred_check_branch
          %729 = sbr.rel (%p727) target = $region80
        $region79: #{decoder_forward.1} parent=55 // pred_region
          %731 = vsyncadd [#allocation9], 0
          %s732 = sshll.u32 [#allocation10], 4
          %s733 = int_to_ptr.vmem [resolvable:$true] %s732
          %s734 = sshll.u32 %s11, 4
          %s735 = int_to_ptr.hbm [resolvable:$true] %s734
          %740 = dma.vmem_to_hbm [thread:$0]  %s733, 256, %s735, [#allocation9], 128, 128, 8
        $region80: #{decoder_forward.1} parent=55 // pred_fallthru
          _
        // Predicated region
        $region81: #{decoder_forward.1} parent=55 // pred_check
          %p741 = pneg %p262
        $region82: #{decoder_forward.1} parent=55 // pred_check_branch
          %743 = sbr.rel (%p741) target = $region84
        $region83: #{decoder_forward.1} parent=55 // pred_region
          %745 = dma.done [#allocation9], 256
        $region84: #{decoder_forward.1} parent=55 // pred_fallthru
          _
        // Predicated region
        $region85: #{decoder_forward.1} parent=55 // pred_check
          %p746 = pneg %p283
        $region86: #{decoder_forward.1} parent=55 // pred_check_branch
          %748 = sbr.rel (%p746) target = $region88
        $region87: #{decoder_forward.1} parent=55 // pred_region
          %750 = dma.done [#allocation9], 256
        $region88: #{decoder_forward.1} parent=55 // pred_fallthru
          _
      $region56: #{decoder_forward.1} parent=5 // pred_fallthru
        _
      %p751 = scmp.le.s32.totalorder 2, %s24
      // Predicated region
      $region89: #{decoder_forward.1} parent=5 // pred_check
        %p752 = pneg %p751
      $region90: #{decoder_forward.1} parent=5 // pred_check_branch
        %754 = sbr.rel (%p752) target = $region92
      $region91: #{decoder_forward.1} parent=5 // pred_region
        %s755 = ssub.s32 %s24, 2
        // Predicated region
        $region93: #{decoder_forward.1} parent=91 // pred_check
          %p756 = pneg %p247
        $region94: #{decoder_forward.1} parent=91 // pred_check_branch
          %758 = sbr.rel (%p756) target = $region96
        $region95: #{decoder_forward.1} parent=91 // pred_region
          %s759 = sand.u32 %s232, 1
          %s760 = scalar_lea.sflag [#allocation4], %s759
          %s761 = sand.u32 %s232, 1
          %s762 = smul.addr %s761, 8
          %s763 = scalar_lea.vmem [#allocation7], %s762
          %765 = dma.done %s760, 128
        $region96: #{decoder_forward.1} parent=91 // pred_fallthru
          _
      $region92: #{decoder_forward.1} parent=5 // pred_fallthru
        _
    $region6: #{decoder_forward.1} parent=1 // loop_footer
      %s28 = sadd.s32 1, %s24
    $region7: #{decoder_forward.1} parent=1 // loop_footer_branch
      %23 = sbr.rel target = $region3
    $region8: #{decoder_forward.1} parent=1 // loop_exit
      _
    %766 = vsyncpa [#allocation3], 1
    %s767 = scalar_lea.sflag [#allocation3], 1
    %768 = vsyncpa %s767, 1
    %769 = vsyncpa [#allocation6], 1
    %770 = vsyncpa [#allocation4], 1
    %s771 = scalar_lea.sflag [#allocation4], 1
    %772 = vsyncpa %s771, 1
    %773 = vsyncpa [#allocation9], 1

</llo_original>
